<compile_context>
chip_gen: v7x
topology: tpu7x:2x2x1
jax: 0.10.0
libtpu: 0.0.40
codegen_flags: <defaults>
</compile_context>

<pallas_src>
import functools

import jax
import jax.numpy as jnp
from jax.experimental import pallas as pl
from jax.experimental.pallas import tpu as pltpu


def _round_up(x, m):
    return ((x + m - 1) // m) * m


def _pick_tile_pixels(hw, c, itemsize, max_tile=8192, budget_bytes=4 << 20):
    """Largest lane-aligned (multiple of 128) pixel tile whose logits block
    stays under ~4 MiB, so double buffering fits comfortably even on v7x's
    smaller VMEM (32 MiB scoped default)."""
    hw_lanes = _round_up(hw, 128)
    by_budget = max(128, (budget_bytes // max(1, c * itemsize)) // 128 * 128)
    tile = min(max_tile, hw_lanes, by_budget)
    return max(128, (tile // 128) * 128)


def _pixel_ce_math(logits_ref, target_ref):
    """Shared per-pixel CE math for one (1, C, TP) / (1, 1, TP) block pair.

    Returns (1, TP) float32 losses (logsumexp - target logit)."""
    x = logits_ref[0].astype(jnp.float32)                   # (C, TP)
    t = target_ref[0]                                        # (1, TP) int32

    # numerically-stable logsumexp over classes (sublane axis)
    m = jnp.max(x, axis=0, keepdims=True)                    # (1, TP)
    lse = m + jnp.log(jnp.sum(jnp.exp(x - m), axis=0, keepdims=True))

    # gather target-class logit via iota-compare + select (VPU/XLU filler,
    # kernel is HBM-bandwidth bound so this is effectively free)
    cls = jax.lax.broadcasted_iota(jnp.int32, x.shape, 0)    # (C, TP)
    tgt = jnp.sum(jnp.where(cls == t, x, 0.0), axis=0, keepdims=True)

    return lse - tgt                                          # (1, TP)


def _ce_pixel_kernel(logits_ref, target_ref, loss_ref):
    """Per-pixel CE for one tile of pixels.

    logits_ref: (1, C, TP)   target_ref: (1, 1, TP) int32
    loss_ref:   (1, 1, TP) float32 (lane-dense output)
    """
    loss_ref[0] = _pixel_ce_math(logits_ref, target_ref)


def _ce_mean_kernel(logits_ref, target_ref, acc_ref, *, tile_p, hw):
    """Warm-phase kernel: accumulate masked per-pixel losses lane-wise into a
    resident (1, TP) accumulator block (final tiny sum/divide done outside)."""
    n = pl.program_id(0)
    p = pl.program_id(1)

    @pl.when(jnp.logical_and(n == 0, p == 0))
    def _():
        acc_ref[...] = jnp.zeros_like(acc_ref)

    loss = _pixel_ce_math(logits_ref, target_ref)             # (1, TP)

    # mask padded tail pixels (padding only exists along the H*W axis)
    lane = jax.lax.broadcasted_iota(jnp.int32, loss.shape, 1)
    valid = (p * tile_p + lane) < hw
    acc_ref[...] += jnp.where(valid, loss, 0.0)


def _prep_inputs(logits_nchw, target_nhw):
    N, C, H, W = logits_nchw.shape
    HW = H * W
    tile = _pick_tile_pixels(HW, C, logits_nchw.dtype.itemsize)
    hw_pad = _round_up(HW, tile)

    # Pure reshapes -- no NCHW->NHWC transpose / extra HBM pass.
    # Logits stay in their incoming dtype (e.g. bf16) over the wire; the
    # kernel upcasts to f32 in-register.
    x = logits_nchw.reshape(N, C, HW)
    t = target_nhw.reshape(N, 1, HW).astype(jnp.int32)
    if hw_pad != HW:
        x = jnp.pad(x, ((0, 0), (0, 0), (0, hw_pad - HW)))
        t = jnp.pad(t, ((0, 0), (0, 0), (0, hw_pad - HW)))
    return x, t, N, C, HW, hw_pad, tile


@jax.jit
def _per_pixel_ce(logits_nchw, target_nhw):
    """Per-pixel cross-entropy, shape (N*H*W,), float32."""
    x, t, N, C, HW, hw_pad, tile = _prep_inputs(logits_nchw, target_nhw)

    losses = pl.pallas_call(
        _ce_pixel_kernel,
        out_shape=jax.ShapeDtypeStruct((N, 1, hw_pad), jnp.float32),
        grid_spec=pltpu.PrefetchScalarGridSpec(
            num_scalar_prefetch=0,
            grid=(N, hw_pad // tile),
            in_specs=[
                pl.BlockSpec((1, C, tile), lambda n, p: (n, 0, p)),
                pl.BlockSpec((1, 1, tile), lambda n, p: (n, 0, p)),
            ],
            out_specs=pl.BlockSpec((1, 1, tile), lambda n, p: (n, 0, p)),
        ),
        compiler_params=pltpu.CompilerParams(
            # independent tiles -> shard across both TensorCores on v7x
            dimension_semantics=("parallel", "parallel")),
    )(x, t)

    return losses[:, 0, :HW].reshape(-1)


@jax.jit
def _mean_ce(logits_nchw, target_nhw):
    """Warm-phase mean cross-entropy (mean fused into the kernel)."""
    x, t, N, C, HW, hw_pad, tile = _prep_inputs(logits_nchw, target_nhw)

    kernel = functools.partial(_ce_mean_kernel, tile_p=tile, hw=HW)
    acc = pl.pallas_call(
        kernel,
        out_shape=jax.ShapeDtypeStruct((1, tile), jnp.float32),
        grid_spec=pltpu.PrefetchScalarGridSpec(
            num_scalar_prefetch=0,
            grid=(N, hw_pad // tile),
            in_specs=[
                pl.BlockSpec((1, C, tile), lambda n, p: (n, 0, p)),
                pl.BlockSpec((1, 1, tile), lambda n, p: (n, 0, p)),
            ],
            # same output block every step -> resident lane-wise accumulator
            out_specs=pl.BlockSpec((1, tile), lambda n, p: (0, 0)),
        ),
        compiler_params=pltpu.CompilerParams(
            # accumulator is shared across the whole grid -> must be serial
            dimension_semantics=("arbitrary", "arbitrary")),
    )(x, t)

    return jnp.sum(acc) / jnp.float32(N * HW)


class BootstrappedCE:
    """JAX/Pallas port of the PyTorch BootstrappedCE module (no parameters)."""

    def __init__(self, start_warm=0.2, end_warm=0.6, top_p=0.15):
        self.start_warm = start_warm
        self.end_warm = end_warm
        self.top_p = top_p

    def __call__(self, input, target, it):
        # `it` is a plain Python scalar -> branching stays in Python,
        # exactly like the PyTorch forward.
        if it < self.start_warm:
            return _mean_ce(input, target)

        raw_loss = _per_pixel_ce(input, target)                 # (P,)
        num_pixels = raw_loss.shape[0]

        if it > self.end_warm:
            this_p = self.top_p
        else:
            this_p = self.top_p + (1.0 - self.top_p) * (
                (self.end_warm - it) / (self.end_warm - self.start_warm)
            )

        k = max(1, int(num_pixels * this_p))  # guard k=0 -> NaN mean
        # TODO(synk): top-k selection over the flat loss vector has no clean
        # Pallas primitive; it is done with jax.lax.top_k on the kernel output.
        top, _ = jax.lax.top_k(raw_loss, k)
        return jnp.mean(top)


def _ref_per_pixel_ce(logits_nchw, target_nhw):
    """Pure-JAX reference for a sanity check."""
    N, C, H, W = logits_nchw.shape
    x = jnp.transpose(logits_nchw, (0, 2, 3, 1)).reshape(-1, C).astype(jnp.float32)
    t = target_nhw.reshape(-1)
    logp = jax.nn.log_softmax(x, axis=-1)
    return -jnp.take_along_axis(logp, t[:, None], axis=-1)[:, 0]


if __name__ == "__main__":
    key = jax.random.PRNGKey(0)
    k_logits, k_target = jax.random.split(key)

    N, C, H, W = 2, 4, 16, 16
    logits = jax.random.normal(k_logits, (N, C, H, W), dtype=jnp.float32)
    target = jax.random.randint(k_target, (N, H, W), 0, C, dtype=jnp.int32)

    crit = BootstrappedCE(start_warm=0.2, end_warm=0.6, top_p=0.15)

    # warm phase (fused mean CE) and bootstrap phase (top-p mean)
    loss_warm = crit(logits, target, it=0.1)
    loss_boot = crit(logits, target, it=0.4)
    loss_late = crit(logits, target, it=0.9)
    jax.block_until_ready((loss_warm, loss_boot, loss_late))

    # lightweight correctness check against a pure-JAX reference
    ref_pp = _ref_per_pixel_ce(logits, target)
    got_pp = _per_pixel_ce(logits, target)
    # note: kernel pixel order is (n, hw) == (n, h, w) -> same flat order as ref
    assert jnp.allclose(got_pp, ref_pp, rtol=1e-3, atol=1e-3)
    assert jnp.allclose(loss_warm, jnp.mean(ref_pp), rtol=1e-3, atol=1e-3)

    print("KERNEL_OK")
</pallas_src>

<mosaic_0001>
module attributes {stable_mosaic.version = 11 : i64} {
  func.func @_ce_mean_kernel(%arg0: i32, %arg1: i32, %arg2: memref<1x4x256xf32, #tpu.memory_space<vmem>>, %arg3: memref<1x1x256xi32, #tpu.memory_space<vmem>>, %arg4: memref<1x256xf32, #tpu.memory_space<vmem>>) attributes {dimension_semantics = [#tpu.dimension_semantics<arbitrary>, #tpu.dimension_semantics<arbitrary>], iteration_bounds = array<i64: 2, 1>, scalar_prefetch = 0 : i64, scratch_operands = 0 : i64, tpu.core_type = #tpu.core_type<tc>, window_params = [{transform_indices = @transform_0, window_bounds = array<i64: 1, 4, 256>}, {transform_indices = @transform_1, window_bounds = array<i64: 1, 1, 256>}, {pipeline_mode = #tpu.pipeline_mode<synchronous>, transform_indices = @transform_2, window_bounds = array<i64: 1, 256>}]} {
    %c0_i32 = arith.constant 0 : i32
    %0 = arith.cmpi eq, %arg0, %c0_i32 : i32
    %c0_i32_0 = arith.constant 0 : i32
    %1 = arith.cmpi eq, %arg1, %c0_i32_0 : i32
    %2 = arith.andi %0, %1 : i1
    %3 = arith.extui %2 : i1 to i32
    %c0_i32_1 = arith.constant 0 : i32
    %4 = arith.cmpi ne, %3, %c0_i32_1 : i32
    scf.if %4 {
      %cst_16 = arith.constant 0.000000e+00 : f32
      %37 = vector.broadcast %cst_16 : f32 to vector<1x256xf32>
      %c0_17 = arith.constant 0 : index
      %c0_18 = arith.constant 0 : index
      %38 = vector.load %arg4[%c0_17, %c0_18] : memref<1x256xf32, #tpu.memory_space<vmem>>, vector<1x256xf32>
      tpu.vector_store %arg4[%c0_17, %c0_18], %37 {strides = array<i32>} : memref<1x256xf32, #tpu.memory_space<vmem>>, vector<1x256xf32>,
    } else {
    }
    %c0 = arith.constant 0 : index
    %c0_2 = arith.constant 0 : index
    %c0_3 = arith.constant 0 : index
    %5 = vector.load %arg2[%c0, %c0_2, %c0_3] : memref<1x4x256xf32, #tpu.memory_space<vmem>>, vector<1x4x256xf32>
    %6 = vector.shape_cast %5 : vector<1x4x256xf32> to vector<4x256xf32>
    %c0_4 = arith.constant 0 : index
    %c0_5 = arith.constant 0 : index
    %c0_6 = arith.constant 0 : index
    %7 = vector.load %arg3[%c0_4, %c0_5, %c0_6] : memref<1x1x256xi32, #tpu.memory_space<vmem>>, vector<1x1x256xi32>
    %8 = vector.shape_cast %7 : vector<1x1x256xi32> to vector<1x256xi32>
    %cst = arith.constant dense<0xFF800000> : vector<256xf32>
    %9 = vector.multi_reduction <maximumf>, %6, %cst [0] : vector<4x256xf32> to vector<256xf32>
    %10 = vector.shape_cast %9 : vector<256xf32> to vector<1x256xf32>
    %11 = vector.broadcast %10 : vector<1x256xf32> to vector<4x256xf32>
    %12 = arith.subf %6, %11 : vector<4x256xf32>
    %13 = math.exp %12 : vector<4x256xf32>
    %cst_7 = arith.constant dense<0.000000e+00> : vector<256xf32>
    %14 = vector.multi_reduction <add>, %13, %cst_7 [0] : vector<4x256xf32> to vector<256xf32>
    %15 = vector.shape_cast %14 : vector<256xf32> to vector<1x256xf32>
    %16 = math.log %15 : vector<1x256xf32>
    %17 = arith.addf %10, %16 : vector<1x256xf32>
    %18 = tpu.iota {dimensions = array<i32: 0>} : vector<4x256xi32>
    %19 = vector.broadcast %8 : vector<1x256xi32> to vector<4x256xi32>
    %20 = arith.cmpi eq, %18, %19 : vector<4x256xi32>
    %cst_8 = arith.constant 0.000000e+00 : f32
    %21 = vector.broadcast %cst_8 : f32 to vector<4x256xf32>
    %22 = arith.select %20, %6, %21 : vector<4x256xi1>, vector<4x256xf32>
    %cst_9 = arith.constant dense<0.000000e+00> : vector<256xf32>
    %23 = vector.multi_reduction <add>, %22, %cst_9 [0] : vector<4x256xf32> to vector<256xf32>
    %24 = vector.shape_cast %23 : vector<256xf32> to vector<1x256xf32>
    %25 = arith.subf %17, %24 : vector<1x256xf32>
    %26 = tpu.iota {dimensions = array<i32: 1>} : vector<1x256xi32>
    %c256_i32 = arith.constant 256 : i32
    %27 = arith.muli %arg1, %c256_i32 : i32
    %28 = vector.broadcast %27 : i32 to vector<1x256xi32>
    %29 = arith.addi %28, %26 : vector<1x256xi32>
    %c256_i32_10 = arith.constant 256 : i32
    %30 = vector.broadcast %c256_i32_10 : i32 to vector<1x256xi32>
    %31 = arith.cmpi slt, %29, %30 : vector<1x256xi32>
    %c0_11 = arith.constant 0 : index
    %c0_12 = arith.constant 0 : index
    %32 = vector.load %arg4[%c0_11, %c0_12] : memref<1x256xf32, #tpu.memory_space<vmem>>, vector<1x256xf32>
    %cst_13 = arith.constant 0.000000e+00 : f32
    %33 = vector.broadcast %cst_13 : f32 to vector<1x256xf32>
    %34 = arith.select %31, %25, %33 : vector<1x256xi1>, vector<1x256xf32>
    %35 = arith.addf %32, %34 : vector<1x256xf32>
    %c0_14 = arith.constant 0 : index
    %c0_15 = arith.constant 0 : index
    %36 = vector.load %arg4[%c0_14, %c0_15] : memref<1x256xf32, #tpu.memory_space<vmem>>, vector<1x256xf32>
    tpu.vector_store %arg4[%c0_14, %c0_15], %35 {strides = array<i32>} : memref<1x256xf32, #tpu.memory_space<vmem>>, vector<1x256xf32>,
    return
  }
  func.func @transform_0(%arg0: i32, %arg1: i32) -> (i32, i32, i32) {
    %c0_i32 = arith.constant 0 : i32
    %c0_i32_0 = arith.constant 0 : i32
    return %arg0, %c0_i32, %arg1 : i32, i32, i32
  }
  func.func @transform_1(%arg0: i32, %arg1: i32) -> (i32, i32, i32) {
    %c0_i32 = arith.constant 0 : i32
    %c0_i32_0 = arith.constant 0 : i32
    return %arg0, %c0_i32, %arg1 : i32, i32, i32
  }
  func.func @transform_2(%arg0: i32, %arg1: i32) -> (i32, i32) {
    %c0_i32 = arith.constant 0 : i32
    %c0_i32_0 = arith.constant 0 : i32
    %c0_i32_1 = arith.constant 0 : i32
    return %c0_i32, %c0_i32_0 : i32, i32
  }
}

</mosaic_0001>

<llo_original>
// kernel: _mean_ce.1
$region0: #{_mean_ce.1}
  #allocation0 [shape = 'u32[]', space=smem, size = 0x4, offset = 0x4, fixed_abs, tag = 'smem constant byte address 0x4 - core index']
  #allocation1 [shape = 'u32[144,128]{1,0:T(1,128)}', space=vmem, size = 0x12000, scoped, tag = 'internal scratch']
  %s0 = inlined_call_operand.vmem [shape: f32[2,4,256], index: 0, kind: input, shape index: {}]
  %s1 = inlined_call_operand.vmem [shape: s32[2,1,256], index: 1, kind: input, shape index: {}]
  %s2 = inlined_call_operand.vmem [shape: f32[1,256], index: 2, kind: output, shape index: {}]
  %s3 = sld [smem:[#allocation0]]
  $region45: #{_mean_ce.1} parent=0
    _
  %s5 = ssub.s32 1, %s3
  %s6 = scalar_select 0, %s5, %s3
  loop: start=0, step=1, limit=4
  $region2: #{_mean_ce.1} parent=0 // loop_pre_header
    _
  $region3: #{_mean_ce.1} parent=0 // loop_header
    %s8 = sphi 0, %s12
    %p9 = scmp.ge.s32.totalorder %s8, 4
    %s15 = sphi 0, %s27
    %s16 = sphi 0, %s23
    %s17 = sphi 0, %s15
    %s18 = sphi 0, %s16
    %s19 = sphi 0, %s17
    %s20 = sphi 0, %s18
    %s32 = sphi 0, %s34
    %s35 = sphi 0, %s32
    %s36 = sphi 0, %s35
    %s52 = sphi 0, %s36
    %s60 = sphi 0, %s62
    %s63 = sphi 0, %s60
    %s64 = sphi 0, %s63
    %s80 = sphi 0, %s64
    %s84 = sphi 0, %s84
    %s86 = sphi 0, %s84
    %s87 = sphi 0, %s86
    %s101 = sphi 0, %s87
  $region4: #{_mean_ce.1} parent=0 // loop_header_branch
    %11 = sbr.rel (%p9) target = $region8
  $region5: #{_mean_ce.1} parent=0 // loop_body
    %s13 = ssub.s32 %s8, 1
    %s14 = ssub.s32 %s8, 2
    %s21 = sadd.s32 1, %s16
    %p22 = scmp.ge.s32.totalorder %s21, 1
    %s23 = scalar_select %p22, 0, %s21
    %s24 = sadd.s32 1, %s15
    %s25 = scalar_select %p22, %s24, %s15
    %p26 = scmp.ge.s32.totalorder %s25, 2
    %s27 = scalar_select %p26, 0, %s25
    %s28 = ssub.s32 %s15, %s27
    %s29 = ssub.s32 %s16, %s23
    %s30 = sor.u32 %s28, %s29
    %p31 = scmp.eq.s32.totalorder %s30, 0
    %s33 = sadd.s32 %s32, 1
    %s34 = scalar_select %p31, %s32, %s33
    %p37 = pneg %p31
    %p38 = scmp.eq.s32.totalorder %s8, 1
    %p39 = por %p37, %p38
    %p40 = scmp.ne.s32.totalorder %s32, %s35
    %p41 = scmp.eq.s32.totalorder %s8, 0
    %p42 = por %p40, %p41
    %p43 = scmp.ne.s32.totalorder %s32, %s35
    %p44 = scmp.eq.s32.totalorder %s13, 1
    %p45 = por %p43, %p44
    %p46 = scmp.ne.s32.totalorder %s35, %s36
    %p47 = scmp.eq.s32.totalorder %s13, 0
    %p48 = por %p46, %p47
    %p49 = scmp.ne.s32.totalorder %s35, %s36
    %p50 = scmp.eq.s32.totalorder %s14, 1
    %p51 = por %p49, %p50
    %p53 = scmp.ne.s32.totalorder %s36, %s52
    %p54 = scmp.eq.s32.totalorder %s14, 0
    %p55 = por %p53, %p54
    %s56 = ssub.s32 %s15, %s27
    %s57 = ssub.s32 %s16, %s23
    %s58 = sor.u32 %s56, %s57
    %p59 = scmp.eq.s32.totalorder %s58, 0
    %s61 = sadd.s32 %s60, 1
    %s62 = scalar_select %p59, %s60, %s61
    %p65 = pneg %p59
    %p66 = scmp.eq.s32.totalorder %s8, 1
    %p67 = por %p65, %p66
    %p68 = scmp.ne.s32.totalorder %s60, %s63
    %p69 = scmp.eq.s32.totalorder %s8, 0
    %p70 = por %p68, %p69
    %p71 = scmp.ne.s32.totalorder %s60, %s63
    %p72 = scmp.eq.s32.totalorder %s13, 1
    %p73 = por %p71, %p72
    %p74 = scmp.ne.s32.totalorder %s63, %s64
    %p75 = scmp.eq.s32.totalorder %s13, 0
    %p76 = por %p74, %p75
    %p77 = scmp.ne.s32.totalorder %s63, %s64
    %p78 = scmp.eq.s32.totalorder %s14, 1
    %p79 = por %p77, %p78
    %p81 = scmp.ne.s32.totalorder %s64, %s80
    %p82 = scmp.eq.s32.totalorder %s14, 0
    %p83 = por %p81, %p82
    %s85 = sadd.s32 %s84, 1
    %p88 = scmp.eq.s32.totalorder %s8, 1
    %p89 = scmp.ne.s32.totalorder %s84, %s86
    %p90 = scmp.eq.s32.totalorder %s8, 0
    %p91 = por %p89, %p90
    %p92 = scmp.ne.s32.totalorder %s84, %s86
    %p93 = scmp.eq.s32.totalorder %s13, 1
    %p94 = por %p92, %p93
    %p95 = scmp.ne.s32.totalorder %s86, %s87
    %p96 = scmp.eq.s32.totalorder %s13, 0
    %p97 = por %p95, %p96
    %p98 = scmp.ne.s32.totalorder %s86, %s87
    %p99 = scmp.eq.s32.totalorder %s14, 1
    %p100 = por %p98, %p99
    %p102 = scmp.ne.s32.totalorder %s87, %s101
    %p103 = scmp.eq.s32.totalorder %s14, 0
    %p104 = por %p102, %p103
    %p105 = scmp.le.s32.totalorder 1, %s8
    %p106 = scmp.lt.s32.totalorder %s8, 3
    %p107 = pnand %p105, %p106
    %p108 = pneg %p107
    // Predicated region
    $region9: #{_mean_ce.1} parent=5 // pred_check
      _
    $region10: #{_mean_ce.1} parent=5 // pred_check_branch
      %110 = sbr.rel (%p107) target = $region12
    $region11: #{_mean_ce.1} parent=5 // pred_region
      %s111 = ssub.s32 %s8, 1
    $region12: #{_mean_ce.1} parent=5 // pred_fallthru
      _
    %p112 = scmp.lt.s32.totalorder %s8, 2
    // Predicated region
    $region13: #{_mean_ce.1} parent=5 // pred_check
      %p113 = pneg %p112
    $region14: #{_mean_ce.1} parent=5 // pred_check_branch
      %115 = sbr.rel (%p113) target = $region16
    $region15: #{_mean_ce.1} parent=5 // pred_region
      // Predicated region
      $region17: #{_mean_ce.1} parent=15 // pred_check
        %p116 = pneg %p42
      $region18: #{_mean_ce.1} parent=15 // pred_check_branch
        %118 = sbr.rel (%p116) target = $region20
      $region19: #{_mean_ce.1} parent=15 // pred_region
        %s119 = smul.u32 2, %s16
        %p120 = scmp.lt.s32.totalorder %s15, 1
        %s121 = scalar_select %p120, %s15, 1
        %p122 = scmp.lt.s32.totalorder %s119, 1
        %s123 = scalar_select %p122, %s119, 1
        %s124 = smul.addr %s121, 2
        %s125 = sadd.s32 %s123, %s124
        %s126 = smul.addr %s125, 4
        %s127 = scalar_lea.vmem %s0, %s126
        %s128 = smul.u32 2, %s16
      $region20: #{_mean_ce.1} parent=15 // pred_fallthru
        _
      // Predicated region
      $region21: #{_mean_ce.1} parent=15 // pred_check
        %p129 = pneg %p70
      $region22: #{_mean_ce.1} parent=15 // pred_check_branch
        %131 = sbr.rel (%p129) target = $region24
      $region23: #{_mean_ce.1} parent=15 // pred_region
        %s132 = smul.u32 2, %s16
        %p133 = scmp.lt.s32.totalorder %s15, 1
        %s134 = scalar_select %p133, %s15, 1
        %p135 = scmp.lt.s32.totalorder %s132, 1
        %s136 = scalar_select %p135, %s132, 1
        %s137 = smul.addr %s134, 2
        %s138 = sadd.s32 %s136, %s137
        %s139 = scalar_lea.vmem %s1, %s138
        %s140 = smul.u32 2, %s16
      $region24: #{_mean_ce.1} parent=15 // pred_fallthru
        _
    $region16: #{_mean_ce.1} parent=5 // pred_fallthru
      _
    %p141 = scmp.le.s32.totalorder 1, %s8
    %p142 = scmp.lt.s32.totalorder %s8, 3
    %p143 = pnand %p141, %p142
    %p144 = pneg %p143
    // Predicated region
    $region25: #{_mean_ce.1} parent=5 // pred_check
      _
    $region26: #{_mean_ce.1} parent=5 // pred_check_branch
      %146 = sbr.rel (%p143) target = $region28
    $region27: #{_mean_ce.1} parent=5 // pred_region
      %s147 = ssub.s32 %s8, 1
      %s148 = smul.u32 2, %s18
      %p149 = scmp.lt.s32.totalorder %s17, 1
      %s150 = scalar_select %p149, %s17, 1
      %p151 = scmp.lt.s32.totalorder %s148, 1
      %s152 = scalar_select %p151, %s148, 1
      %s153 = smul.addr %s150, 2
      %s154 = sadd.s32 %s152, %s153
      %s155 = smul.addr %s154, 4
      %s156 = scalar_lea.vmem %s0, %s155
      %p157 = pneg %p48
      %p158 = pneg %p45
      %s159 = smul.u32 2, %s18
      %p160 = scmp.lt.s32.totalorder %s17, 1
      %s161 = scalar_select %p160, %s17, 1
      %p162 = scmp.lt.s32.totalorder %s159, 1
      %s163 = scalar_select %p162, %s159, 1
      %s164 = smul.addr %s161, 2
      %s165 = sadd.s32 %s163, %s164
      %s166 = scalar_lea.vmem %s1, %s165
      %p167 = pneg %p76
      %p168 = pneg %p73
      %p169 = pneg %p97
      %p170 = pneg %p94
      %s171 = smul.u32 2, %s18
      %p172 = scmp.lt.s32.totalorder %s17, 1
      %s173 = scalar_select %p172, %s17, 1
      %p174 = scmp.lt.s32.totalorder %s171, 1
      %s175 = scalar_select %p174, %s171, 1
      %s176 = smul.addr %s173, 2
      %s177 = sadd.s32 %s175, %s176
      %s178 = smul.addr %s177, 4
      %s179 = scalar_lea.vmem %s0, %s178
      %s180 = smul.u32 2, %s18
      %s181 = smul.u32 2, %s18
      %p182 = scmp.lt.s32.totalorder %s17, 1
      %s183 = scalar_select %p182, %s17, 1
      %p184 = scmp.lt.s32.totalorder %s181, 1
      %s185 = scalar_select %p184, %s181, 1
      %s186 = smul.addr %s183, 2
      %s187 = sadd.s32 %s185, %s186
      %s188 = scalar_lea.vmem %s1, %s187
      %s189 = smul.u32 2, %s18
      %p190 = scmp.eq.s32.totalorder %s17, 0
      %p191 = scmp.eq.s32.totalorder %s18, 0
      %p192 = pnand %p190, %p191
      %p193 = pneg %p192
      // Predicated region
      $region29: #{_mean_ce.1} parent=27 // pred_check
        _
      $region30: #{_mean_ce.1} parent=27 // pred_check_branch
        %195 = sbr.rel (%p192) target = $region32
      $region31: #{_mean_ce.1} parent=27 // pred_region
        %v196 = vlaneseq
        %vm197 = vcmp.ge.s32.totalorder %v196, 0
        %vm198 = vcmp.lt.s32.totalorder %v196, 256
        %vm199 = vmand %vm197, %vm198
        %200 = vst.msk [vmem:[%s2] sm:$0x3] %vm199, 0.0
      $region32: #{_mean_ce.1} parent=27 // pred_fallthru
        _
      %v201 = vld [vmem:[%s179] sm:$0xff]
      %v202 = vld [vmem:[%s188] sm:$0x3]
      %v204 = vcombine.high %v201, %v201
      %vm206 = vcmask 1043456
      %v207 = vsel %vm206, %v201, -inf
      %v208 = vrot.slane %v207, 4
      %v209 = vmax.f32 %v207, %v208
      %v210 = vrot.slane %v209, 2
      %v211 = vmax.f32 %v209, %v210
      %v212 = vrot.slane %v211, 1
      %v213 = vmax.f32 %v211, %v212
      %v214 = vsel %vm206, %v204, -inf
      %v215 = vrot.slane %v214, 4
      %v216 = vmax.f32 %v214, %v215
      %v217 = vrot.slane %v216, 2
      %v218 = vmax.f32 %v216, %v217
      %v219 = vrot.slane %v218, 1
      %v220 = vmax.f32 %v218, %v219
      %v223 = vcombine.low %v213, %v220
      %v225 = vsub.f32 %v201, %v223
      %v226 = vmul.f32 %v225, 1.442695
      %v227 = vpow.pop %v226
      %v229 = vcombine.high %v227, %v227
      %v231 = vsel %vm206, %v227, 0.0
      %v232 = vrot.slane %v231, 4
      %v233 = vadd.f32 %v231, %v232
      %v234 = vrot.slane %v233, 2
      %v235 = vadd.f32 %v233, %v234
      %v236 = vrot.slane %v235, 1
      %v237 = vadd.f32 %v235, %v236
      %v238 = vsel %vm206, %v229, 0.0
      %v239 = vrot.slane %v238, 4
      %v240 = vadd.f32 %v238, %v239
      %v241 = vrot.slane %v240, 2
      %v242 = vadd.f32 %v240, %v241
      %v243 = vrot.slane %v242, 1
      %v244 = vadd.f32 %v242, %v243
      %v245 = vlog2.pop %v237
      %v246 = vmul.f32 %v245, 0.6931472
      %v247 = vlog2.pop %v244
      %v248 = vmul.f32 %v247, 0.6931472
      %v249 = vadd.f32 %v213, %v246
      %v250 = vadd.f32 %v220, %v248
      %v251 = vlaneseq
      %v252 = vshrl.u32 %v251, 7
      %v253 = vlaneseq
      %v254 = vshrl.u32 %v253, 7
      %v255 = vsub.s32 0, %v254
      %v256 = vrot.slane %v202, %v255
      %v257 = vlaneseq
      %v258 = vshrl.u32 %v257, 7
      %v259 = vsub.s32 1, %v258
      %v260 = vrot.slane %v202, %v259
      %vm261 = vcmp.eq.s32.totalorder %v252, %v256
      %vm262 = vcmp.eq.s32.totalorder %v252, %v260
      %v263 = vsel %vm261, %v201, 0.0
      %v264 = vsel %vm262, %v204, 0.0
      %v265 = vsel %vm206, %v263, 0.0
      %v266 = vrot.slane %v265, 4
      %v267 = vadd.f32 %v265, %v266
      %v268 = vrot.slane %v267, 2
      %v269 = vadd.f32 %v267, %v268
      %v270 = vrot.slane %v269, 1
      %v271 = vadd.f32 %v269, %v270
      %v272 = vsel %vm206, %v264, 0.0
      %v273 = vrot.slane %v272, 4
      %v274 = vadd.f32 %v272, %v273
      %v275 = vrot.slane %v274, 2
      %v276 = vadd.f32 %v274, %v275
      %v277 = vrot.slane %v276, 1
      %v278 = vadd.f32 %v276, %v277
      %v279 = vsub.f32 %v249, %v271
      %v280 = vsub.f32 %v250, %v278
      %v281 = vlaneseq
      %v282 = vand.u32 %v281, 127
      %v283 = vadd.s32 %v282, 128
      %s284 = smul.u32 %s18, 256
      %v285 = vstv %s284
      %v286 = vadd.s32 %v285, %v282
      %v287 = vadd.s32 %v285, %v283
      %vm288 = vcmp.lt.s32.totalorder %v286, 256
      %vm289 = vcmp.lt.s32.totalorder %v287, 256
      %v290 = vld [vmem:[%s2] sm:$0x3]
      %v291 = vsel %vm288, %v279, 0.0
      %v292 = vsel %vm289, %v280, 0.0
      %v295 = vcombine.low %v291, %v292
      %v297 = vunpack.c.l.s4 1966171168
      %v298 = vunpack.c.0.s8 %v297
      %v299 = vlaneseq
      %v300 = vshrl.u32 %v299, 7
      %v301 = vsub.s32 %v298, %v300
      %v302 = vrot.slane %v295, %v301
      %v304 = vunpack.c.l.s4 1966171168
      %v305 = vunpack.c.0.s8 %v304
      %v306 = vlaneseq
      %v307 = vshrl.u32 %v306, 7
      %v308 = vsub.s32 %v305, %v307
      %v309 = vrot.slane %v302, %v308
      %v311 = vadd.f32 %v290, %v309
      %v312 = vlaneseq
      %vm313 = vcmp.ge.s32.totalorder %v312, 0
      %vm314 = vcmp.lt.s32.totalorder %v312, 256
      %vm315 = vmand %vm313, %vm314
      %316 = vst.msk [vmem:[%s2] sm:$0x3] %vm315, %v311
      // Predicated region
      $region33: #{_mean_ce.1} parent=27 // pred_check
        %p317 = pneg %p94
      $region34: #{_mean_ce.1} parent=27 // pred_check_branch
        %319 = sbr.rel (%p317) target = $region36
      $region35: #{_mean_ce.1} parent=27 // pred_region
        _
      $region36: #{_mean_ce.1} parent=27 // pred_fallthru
        _
      // Predicated region
      $region37: #{_mean_ce.1} parent=27 // pred_check
        %p320 = pneg %p94
      $region38: #{_mean_ce.1} parent=27 // pred_check_branch
        %322 = sbr.rel (%p320) target = $region40
      $region39: #{_mean_ce.1} parent=27 // pred_region
        _
      $region40: #{_mean_ce.1} parent=27 // pred_fallthru
        _
    $region28: #{_mean_ce.1} parent=5 // pred_fallthru
      _
    %p323 = scmp.le.s32.totalorder 2, %s8
    // Predicated region
    $region41: #{_mean_ce.1} parent=5 // pred_check
      %p324 = pneg %p323
    $region42: #{_mean_ce.1} parent=5 // pred_check_branch
      %326 = sbr.rel (%p324) target = $region44
    $region43: #{_mean_ce.1} parent=5 // pred_region
      %s327 = ssub.s32 %s8, 2
    $region44: #{_mean_ce.1} parent=5 // pred_fallthru
      _
  $region6: #{_mean_ce.1} parent=0 // loop_footer
    %s12 = sadd.s32 1, %s8
  $region7: #{_mean_ce.1} parent=0 // loop_footer_branch
    %7 = sbr.rel target = $region3
  $region8: #{_mean_ce.1} parent=0 // loop_exit
    _

</llo_original>
